<compile_context>
chip_gen: v7x
topology: tpu7x:2x2x1
jax: 0.10.0
libtpu: 0.0.40
codegen_flags: <defaults>
</compile_context>

<pallas_src>
import math

import jax
import jax.numpy as jnp
from jax.experimental import pallas as pl
from jax.experimental.pallas import tpu as pltpu


# ----------------------------------------------------------------------------
# small helpers
# ----------------------------------------------------------------------------
def _round_up(x, m):
    return ((x + m - 1) // m) * m


def _sublane_multiple(dtype):
    itemsize = jnp.dtype(dtype).itemsize
    return {4: 8, 2: 16, 1: 32}.get(itemsize, 8)


def _vmem_capacity_bytes(default=64 << 20):
    """Device VMEM capacity; conservative 64 MiB fallback (covers v7x)."""
    try:
        info = pltpu.get_tpu_info()
        cap = getattr(info, "vmem_capacity_bytes", None)
        if cap:
            return int(cap)
    except Exception:
        pass
    return default


# ----------------------------------------------------------------------------
# kernels: (tm, tk) @ (tk, tn) with K as the innermost reduction grid axis.
# Output block index is constant across K, so o_ref / acc_ref are resident
# accumulators.  Bias (when present) is folded into the k == 0 init.
# ----------------------------------------------------------------------------
def _mm_kernel_f32out(x_ref, w_ref, o_ref):
    @pl.when(pl.program_id(2) == 0)
    def _():
        o_ref[...] = jnp.zeros_like(o_ref)

    o_ref[...] += jnp.dot(x_ref[...], w_ref[...],
                          preferred_element_type=jnp.float32)


def _mm_bias_kernel_f32out(x_ref, w_ref, b_ref, o_ref):
    @pl.when(pl.program_id(2) == 0)
    def _():
        o_ref[...] = jnp.broadcast_to(b_ref[...], o_ref.shape).astype(o_ref.dtype)

    o_ref[...] += jnp.dot(x_ref[...], w_ref[...],
                          preferred_element_type=jnp.float32)


def _mm_kernel_acc(x_ref, w_ref, o_ref, acc_ref):
    k = pl.program_id(2)

    @pl.when(k == 0)
    def _():
        acc_ref[...] = jnp.zeros_like(acc_ref)

    acc_ref[...] += jnp.dot(x_ref[...], w_ref[...],
                            preferred_element_type=jnp.float32)

    @pl.when(k == pl.num_programs(2) - 1)
    def _():
        o_ref[...] = acc_ref[...].astype(o_ref.dtype)


def _mm_bias_kernel_acc(x_ref, w_ref, b_ref, o_ref, acc_ref):
    k = pl.program_id(2)

    @pl.when(k == 0)
    def _():
        acc_ref[...] = jnp.broadcast_to(b_ref[...], acc_ref.shape)

    acc_ref[...] += jnp.dot(x_ref[...], w_ref[...],
                            preferred_element_type=jnp.float32)

    @pl.when(k == pl.num_programs(2) - 1)
    def _():
        o_ref[...] = acc_ref[...].astype(o_ref.dtype)


# ----------------------------------------------------------------------------
# Module-like wrapper: weight is transposed/padded/cast ONCE at construction.
# ----------------------------------------------------------------------------
class RowParallelLinearTPU:
    """Y = x @ W.T (+ b) with W of shape (output_size, input_size).

    Mirrors Megatron's RowParallelLinear forward at tensor-parallel
    world_size == 1 (scatter/reduce are identity).
    """

    def __init__(self, weight, bias=None, *, skip_bias_add=False,
                 operand_dtype=None, out_dtype=None,
                 tm=512, tn=1024, tk=1024):
        N, K = weight.shape
        self.N, self.K = N, K
        self.skip_bias_add = skip_bias_add
        self.bias = bias
        self.operand_dtype = None if operand_dtype is None else jnp.dtype(operand_dtype)
        self.out_dtype = None if out_dtype is None else jnp.dtype(out_dtype)
        self.tm_default = tm

        # ---- one-time weight prep (hoisted out of the per-call path) -------
        w_t = weight.T  # (K, N)
        if self.operand_dtype is not None:
            w_t = w_t.astype(self.operand_dtype)
        w_dtype = jnp.dtype(w_t.dtype)

        self.tn = _round_up(min(tn, _round_up(N, 128)), 128)
        self.tk = _round_up(min(tk, _round_up(K, 128)), 128)
        self.Kp = _round_up(K, self.tk)
        self.Np = _round_up(N, self.tn)
        if (self.Kp, self.Np) != (K, N):
            # zero padding along K is exact for the matmul; done once here.
            w_t = jnp.pad(w_t, ((0, self.Kp - K), (0, self.Np - N)))
        self.w_t = w_t
        self.w_itemsize = w_dtype.itemsize

        # ---- one-time bias prep --------------------------------------------
        self.add_bias = (bias is not None) and (not skip_bias_add)
        if self.add_bias:
            b2 = bias.astype(jnp.float32).reshape(1, N)
            if self.Np != N:
                b2 = jnp.pad(b2, ((0, 0), (0, self.Np - N)))
            self.b2 = b2
        else:
            self.b2 = None

    def __call__(self, x):
        *lead, K = x.shape
        assert K == self.K, "input feature dim must match weight's second dim"
        M = math.prod(lead) if lead else 1

        x2 = x.reshape(M, K)
        if self.operand_dtype is not None:
            x2 = x2.astype(self.operand_dtype)
        in_dtype = jnp.dtype(x2.dtype)
        out_dtype = self.out_dtype if self.out_dtype is not None else jnp.dtype(x.dtype)

        # ---- activation tiling (only M-dependent work is per-call) --------
        sub = max(_sublane_multiple(in_dtype), _sublane_multiple(out_dtype))
        tm = _round_up(min(self.tm_default, _round_up(M, sub)), sub)
        tn, tk = self.tn, self.tk
        Mp = _round_up(M, tm)
        if (Mp, self.Kp) != (M, K):
            x2 = jnp.pad(x2, ((0, Mp - M), (0, self.Kp - K)))

        grid = (Mp // tm, self.Np // tn, self.Kp // tk)

        # ---- kernel / spec selection ---------------------------------------
        f32_out = out_dtype == jnp.dtype(jnp.float32)
        in_specs = [
            pl.BlockSpec((tm, tk), lambda i, j, k: (i, k)),   # x tile
            pl.BlockSpec((tk, tn), lambda i, j, k: (k, j)),   # W^T tile (cached)
        ]
        operands = [x2, self.w_t]
        if self.add_bias:
            in_specs.append(pl.BlockSpec((1, tn), lambda i, j, k: (0, j)))
            operands.append(self.b2)
            kernel = _mm_bias_kernel_f32out if f32_out else _mm_bias_kernel_acc
        else:
            kernel = _mm_kernel_f32out if f32_out else _mm_kernel_acc
        scratch_shapes = [] if f32_out else [pltpu.VMEM((tm, tn), jnp.float32)]

        # ---- VMEM budget: derived from actual footprint, capped by device ---
        in_itemsize = in_dtype.itemsize
        out_itemsize = jnp.dtype(out_dtype).itemsize
        vmem_needed = (2 * tm * tk * in_itemsize
                       + 2 * tk * tn * self.w_itemsize
                       + 2 * tm * tn * out_itemsize
                       + (2 * tn * 4 if self.add_bias else 0)
                       + (0 if f32_out else tm * tn * 4))
        vmem_cap = _vmem_capacity_bytes()
        vmem_limit = int(min(max(vmem_cap - (8 << 20), vmem_needed + (2 << 20)),
                             max(vmem_needed + (2 << 20), 16 << 20)))

        cost = pl.CostEstimate(
            flops=2 * M * self.N * K,
            transcendentals=0,
            bytes_accessed=(M * K * in_itemsize
                            + K * self.N * self.w_itemsize
                            + (self.N * 4 if self.add_bias else 0)
                            + M * self.N * out_itemsize),
        )

        out = pl.pallas_call(
            kernel,
            out_shape=jax.ShapeDtypeStruct((Mp, self.Np), out_dtype),
            grid_spec=pltpu.PrefetchScalarGridSpec(
                num_scalar_prefetch=0,
                grid=grid,  # (M tiles, N tiles, K tiles) -- K innermost reduction
                in_specs=in_specs,
                out_specs=pl.BlockSpec((tm, tn), lambda i, j, k: (i, j)),
                scratch_shapes=scratch_shapes,
            ),
            compiler_params=pltpu.CompilerParams(
                dimension_semantics=("parallel", "parallel", "arbitrary"),
                vmem_limit_bytes=vmem_limit,
            ),
            cost_estimate=cost,
        )(*operands)

        output = out[:M, :self.N].reshape(*lead, self.N)
        output_bias = self.bias if self.skip_bias_add else None
        return output, output_bias


def row_parallel_linear(x, weight, bias=None, *, skip_bias_add=False,
                        tm=512, tn=1024, tk=1024,
                        operand_dtype=None, out_dtype=None):
    """Functional convenience wrapper (weight prep happens per call here;
    use RowParallelLinearTPU to amortize it across forwards)."""
    layer = RowParallelLinearTPU(weight, bias, skip_bias_add=skip_bias_add,
                                 operand_dtype=operand_dtype, out_dtype=out_dtype,
                                 tm=tm, tn=tn, tk=tk)
    return layer(x)


def xavier_normal(key, out_features, in_features, dtype=jnp.float32):
    # torch.nn.init.xavier_normal_: std = sqrt(2 / (fan_in + fan_out)), gain=1
    std = math.sqrt(2.0 / (in_features + out_features))
    return (std * jax.random.normal(key, (out_features, in_features))).astype(dtype)


if __name__ == "__main__":
    # TODO(synk): tensor-parallel scatter/reduce collectives (and the
    # bias_tp_auto_sync all-reduce) are identity at world_size == 1 and are not
    # implemented as cross-chip DMA here.

    # ---- primary test: cached-weight (module-like) path, f32, fused bias ----
    batch, seq = 2, 8
    input_size, output_size = 256, 128

    key = jax.random.PRNGKey(0)
    kx, kw = jax.random.split(key)

    x = jax.random.normal(kx, (batch, seq, input_size), dtype=jnp.float32)
    weight = xavier_normal(kw, output_size, input_size)      # (out, in_per_partition)
    bias = jnp.zeros((output_size,), dtype=jnp.float32)      # bias zero-init, as in module

    layer = RowParallelLinearTPU(weight, bias)               # W^T prepared once here
    out, out_bias = layer(x)
    out = jax.block_until_ready(out)

    ref = x @ weight.T + bias
    assert out.shape == (batch, seq, output_size)
    assert out_bias is None
    assert jnp.allclose(out, ref, atol=1e-4, rtol=1e-4)

    # ---- skip_bias_add=True: bias-free kernel variant, bias returned --------
    out_s, out_bias_s = RowParallelLinearTPU(weight, bias, skip_bias_add=True)(x)
    out_s = jax.block_until_ready(out_s)
    assert out_bias_s is not None
    assert jnp.allclose(out_s, x @ weight.T, atol=1e-4, rtol=1e-4)

    # ---- ragged shapes: exercises the M/K padding path -----------------------
    xr = jax.random.normal(kx, (3, 5, 200), dtype=jnp.float32)
    wr = xavier_normal(kw, 72, 200)
    br = jnp.zeros((72,), dtype=jnp.float32)
    outr, _ = row_parallel_linear(xr, wr, br)
    outr = jax.block_until_ready(outr)
    refr = xr @ wr.T + br
    assert jnp.allclose(outr, refr, atol=1e-4, rtol=1e-4)

    # ---- bf16 operands / bf16 output: exercises the f32-scratch acc path -----
    xb = x.astype(jnp.bfloat16)
    wb = weight.astype(jnp.bfloat16)
    outb, _ = RowParallelLinearTPU(wb, bias)(xb)
    outb = jax.block_until_ready(outb)
    refb = xb.astype(jnp.float32) @ wb.astype(jnp.float32).T + bias
    assert jnp.allclose(outb.astype(jnp.float32), refb, atol=2e-2, rtol=2e-2)

    print("KERNEL_OK")
</pallas_src>

<mosaic_0001>
module attributes {stable_mosaic.version = 11 : i64} {
  func.func @_mm_bias_kernel_f32out(%arg0: i32, %arg1: i32, %arg2: i32, %arg3: memref<16x256xf32, #tpu.memory_space<vmem>>, %arg4: memref<256x128xf32, #tpu.memory_space<vmem>>, %arg5: memref<1x128xf32, #tpu.memory_space<vmem>>, %arg6: memref<16x128xf32, #tpu.memory_space<vmem>>) attributes {dimension_semantics = [#tpu.dimension_semantics<parallel>, #tpu.dimension_semantics<parallel>, #tpu.dimension_semantics<arbitrary>], iteration_bounds = array<i64: 1, 1, 1>, scalar_prefetch = 0 : i64, scratch_operands = 0 : i64, tpu.core_type = #tpu.core_type<tc>, window_params = [{transform_indices = @transform_0, window_bounds = array<i64: 16, 256>}, {transform_indices = @transform_1, window_bounds = array<i64: 256, 128>}, {transform_indices = @transform_2, window_bounds = array<i64: 1, 128>}, {transform_indices = @transform_3, window_bounds = array<i64: 16, 128>}]} {
    %c0_i32 = arith.constant 0 : i32
    %0 = arith.cmpi eq, %arg2, %c0_i32 : i32
    %1 = arith.extui %0 : i1 to i32
    %c0_i32_0 = arith.constant 0 : i32
    %2 = arith.cmpi ne, %1, %c0_i32_0 : i32
    scf.if %2 {
      %c0_8 = arith.constant 0 : index
      %c0_9 = arith.constant 0 : index
      %9 = vector.load %arg5[%c0_8, %c0_9] : memref<1x128xf32, #tpu.memory_space<vmem>>, vector<1x128xf32>
      %10 = vector.shape_cast %9 : vector<1x128xf32> to vector<1x128xf32>
      %11 = vector.broadcast %10 : vector<1x128xf32> to vector<16x128xf32>
      %c0_10 = arith.constant 0 : index
      %c0_11 = arith.constant 0 : index
      %12 = vector.load %arg6[%c0_10, %c0_11] : memref<16x128xf32, #tpu.memory_space<vmem>>, vector<16x128xf32>
      tpu.vector_store %arg6[%c0_10, %c0_11], %11 {strides = array<i32>} : memref<16x128xf32, #tpu.memory_space<vmem>>, vector<16x128xf32>,
    } else {
    }
    %c0 = arith.constant 0 : index
    %c0_1 = arith.constant 0 : index
    %3 = vector.load %arg6[%c0, %c0_1] : memref<16x128xf32, #tpu.memory_space<vmem>>, vector<16x128xf32>
    %c0_2 = arith.constant 0 : index
    %c0_3 = arith.constant 0 : index
    %4 = vector.load %arg3[%c0_2, %c0_3] : memref<16x256xf32, #tpu.memory_space<vmem>>, vector<16x256xf32>
    %c0_4 = arith.constant 0 : index
    %c0_5 = arith.constant 0 : index
    %5 = vector.load %arg4[%c0_4, %c0_5] : memref<256x128xf32, #tpu.memory_space<vmem>>, vector<256x128xf32>
    %cst = arith.constant dense<0.000000e+00> : vector<16x128xf32>
    %6 = tpu.matmul %4, %5, %cst {dimension_numbers = #tpu.dot_dimension_numbers<[1], [0], [0], [1], [0, 0, 1, 1], [], []>} : vector<16x256xf32>, vector<256x128xf32>, vector<16x128xf32> -> vector<16x128xf32>
    %7 = arith.addf %3, %6 : vector<16x128xf32>
    %c0_6 = arith.constant 0 : index
    %c0_7 = arith.constant 0 : index
    %8 = vector.load %arg6[%c0_6, %c0_7] : memref<16x128xf32, #tpu.memory_space<vmem>>, vector<16x128xf32>
    tpu.vector_store %arg6[%c0_6, %c0_7], %7 {strides = array<i32>} : memref<16x128xf32, #tpu.memory_space<vmem>>, vector<16x128xf32>,
    return
  }
  func.func @transform_0(%arg0: i32, %arg1: i32, %arg2: i32) -> (i32, i32) {
    %c0_i32 = arith.constant 0 : i32
    return %arg0, %arg2 : i32, i32
  }
  func.func @transform_1(%arg0: i32, %arg1: i32, %arg2: i32) -> (i32, i32) {
    %c0_i32 = arith.constant 0 : i32
    return %arg2, %arg1 : i32, i32
  }
  func.func @transform_2(%arg0: i32, %arg1: i32, %arg2: i32) -> (i32, i32) {
    %c0_i32 = arith.constant 0 : i32
    %c0_i32_0 = arith.constant 0 : i32
    return %c0_i32, %arg1 : i32, i32
  }
  func.func @transform_3(%arg0: i32, %arg1: i32, %arg2: i32) -> (i32, i32) {
    %c0_i32 = arith.constant 0 : i32
    return %arg0, %arg1 : i32, i32
  }
}

</mosaic_0001>

<llo_original>
// kernel: tpu_custom_call.1
$region0: #{tpu_custom_call.1}
  #allocation0 [shape = 'u32[]', space=smem, size = 0x4, offset = 0x4, fixed_abs, tag = 'smem constant byte address 0x4 - core index']
  #allocation1 [shape = 'u32[144,128]{1,0:T(1,128)}', space=vmem, size = 0x12000, scoped, tag = 'internal scratch']
  %s0 = inlined_call_operand.hbm [shape: f32[16,256], index: 0, kind: input, shape index: {}]
  %s1 = inlined_call_operand.hbm [shape: f32[256,128], index: 1, kind: input, shape index: {}]
  %s2 = inlined_call_operand.vmem [shape: f32[1,128], index: 2, kind: input, shape index: {}]
  %s3 = inlined_call_operand.hbm [shape: f32[16,128], index: 3, kind: output, shape index: {}]
  %s4 = sld [smem:[#allocation0]]
  $region34: #{tpu_custom_call.1} parent=0
    _
  %s6 = ssub.s32 1, %s4
  %s7 = scalar_select 0, %s6, %s4
  $region1: #{tpu_custom_call.1} parent=0
    #allocation2 [shape = 'u8[16384]{0}', space=vmem, size = 0x4000, scoped, tag = 'input window, operand 0, single buffered']
    #allocation3 [shape = 's32[1]{0}', space=sflag, size = 0x4, scoped, tag = 'scoped memory for tpu_custom_call.1']
    #allocation4 [shape = 's32[1]{0}', space=sflag, size = 0x4, scoped, tag = 'scoped memory for tpu_custom_call.1']
    #allocation5 [shape = 'u8[131072]{0}', space=vmem, size = 0x20000, scoped, tag = 'input window, operand 1, single buffered']
    #allocation6 [shape = 's32[1]{0}', space=sflag, size = 0x4, scoped, tag = 'scoped memory for tpu_custom_call.1']
    #allocation7 [shape = 'u8[8192]{0}', space=vmem, size = 0x2000, scoped, tag = 'output window, operand 0, single buffered']
    %8 = vsyncpa [#allocation3], 0
    %9 = vsyncpa [#allocation6], 0
    %10 = vsyncpa [#allocation4], 0
    // Predicated region
    $region2: #{tpu_custom_call.1} parent=1 // pred_check
      _
    $region3: #{tpu_custom_call.1} parent=1 // pred_check_branch
      %12 = sbr.rel (0) target = $region5
    $region4: #{tpu_custom_call.1} parent=1 // pred_region
      %s14 = ssub.s32 512, 512
      %15 = vsyncadd [#allocation3], %s14
      %s16 = sshll.u32 [#allocation2], 4
      %s17 = int_to_ptr.vmem [resolvable:$true] %s16
      %22 = dma.hbm_to_vmem [thread:$0]  %s0, 512, %s17, [#allocation3], 256, 256, 16
    $region5: #{tpu_custom_call.1} parent=1 // pred_fallthru
      _
    // Predicated region
    $region6: #{tpu_custom_call.1} parent=1 // pred_check
      _
    $region7: #{tpu_custom_call.1} parent=1 // pred_check_branch
      %24 = sbr.rel (0) target = $region9
    $region8: #{tpu_custom_call.1} parent=1 // pred_region
      %s26 = ssub.s32 4096, 4096
      %27 = vsyncadd [#allocation6], %s26
      %s28 = sshll.u32 [#allocation5], 4
      %s29 = int_to_ptr.vmem [resolvable:$true] %s28
      %34 = dma.hbm_to_vmem [thread:$0]  %s1, 4096, %s29, [#allocation6], 128, 128, 8
    $region9: #{tpu_custom_call.1} parent=1 // pred_fallthru
      _
    // Predicated region
    $region10: #{tpu_custom_call.1} parent=1 // pred_check
      _
    $region11: #{tpu_custom_call.1} parent=1 // pred_check_branch
      %36 = sbr.rel (0) target = $region13
    $region12: #{tpu_custom_call.1} parent=1 // pred_region
      _
    $region13: #{tpu_custom_call.1} parent=1 // pred_fallthru
      _
    // Predicated region
    $region14: #{tpu_custom_call.1} parent=1 // pred_check
      _
    $region15: #{tpu_custom_call.1} parent=1 // pred_check_branch
      %38 = sbr.rel (0) target = $region17
    $region16: #{tpu_custom_call.1} parent=1 // pred_region
      %39 = dma.done [#allocation3], 512
    $region17: #{tpu_custom_call.1} parent=1 // pred_fallthru
      _
    // Predicated region
    $region18: #{tpu_custom_call.1} parent=1 // pred_check
      _
    $region19: #{tpu_custom_call.1} parent=1 // pred_check_branch
      %41 = sbr.rel (0) target = $region21
    $region20: #{tpu_custom_call.1} parent=1 // pred_region
      %42 = dma.done [#allocation6], 4096
    $region21: #{tpu_custom_call.1} parent=1 // pred_fallthru
      _
    %p43 = scmp.eq.s32.totalorder 0, 0
    // Predicated region
    $region22: #{tpu_custom_call.1} parent=1 // pred_check
      %p44 = pneg %p43
    $region23: #{tpu_custom_call.1} parent=1 // pred_check_branch
      %46 = sbr.rel (%p44) target = $region25
    $region24: #{tpu_custom_call.1} parent=1 // pred_region
      %v47 = vld [vmem:[%s2] sm:$0x1]
      %v49 = vlaneseq
      %v50 = vshrl.u32 %v49, 7
      %v51 = vsub.s32 0, %v50
      %v52 = vrot.slane %v47, %v51
      %54 = vst [vmem:[#allocation7] sm:$0xff] %v52
      %55 = vst [vmem:[#allocation7 + $0x8] sm:$0xff] %v52
    $region25: #{tpu_custom_call.1} parent=1 // pred_fallthru
      _
    %v56 = vld [vmem:[#allocation7] sm:$0xff]
    %v57 = vld [vmem:[#allocation7 + $0x8] sm:$0xff]
    %v58 = vld [vmem:[#allocation2] sm:$0xff]
    %v59 = vld [vmem:[#allocation2 + $0x8] sm:$0xff]
    %v60 = vld [vmem:[#allocation2 + $0x10] sm:$0xff]
    %v61 = vld [vmem:[#allocation2 + $0x18] sm:$0xff]
    %v62 = vld [vmem:[#allocation5] sm:$0xff]
    %v63 = vld [vmem:[#allocation5 + $0x8] sm:$0xff]
    %v64 = vld [vmem:[#allocation5 + $0x10] sm:$0xff]
    %v65 = vld [vmem:[#allocation5 + $0x18] sm:$0xff]
    %v66 = vld [vmem:[#allocation5 + $0x20] sm:$0xff]
    %v67 = vld [vmem:[#allocation5 + $0x28] sm:$0xff]
    %v68 = vld [vmem:[#allocation5 + $0x30] sm:$0xff]
    %v69 = vld [vmem:[#allocation5 + $0x38] sm:$0xff]
    %v70 = vld [vmem:[#allocation5 + $0x40] sm:$0xff]
    %v71 = vld [vmem:[#allocation5 + $0x48] sm:$0xff]
    %v72 = vld [vmem:[#allocation5 + $0x50] sm:$0xff]
    %v73 = vld [vmem:[#allocation5 + $0x58] sm:$0xff]
    %v74 = vld [vmem:[#allocation5 + $0x60] sm:$0xff]
    %v75 = vld [vmem:[#allocation5 + $0x68] sm:$0xff]
    %v76 = vld [vmem:[#allocation5 + $0x70] sm:$0xff]
    %v77 = vld [vmem:[#allocation5 + $0x78] sm:$0xff]
    %v78 = vld [vmem:[#allocation5 + $0x80] sm:$0xff]
    %v79 = vld [vmem:[#allocation5 + $0x88] sm:$0xff]
    %v80 = vld [vmem:[#allocation5 + $0x90] sm:$0xff]
    %v81 = vld [vmem:[#allocation5 + $0x98] sm:$0xff]
    %v82 = vld [vmem:[#allocation5 + $0xa0] sm:$0xff]
    %v83 = vld [vmem:[#allocation5 + $0xa8] sm:$0xff]
    %v84 = vld [vmem:[#allocation5 + $0xb0] sm:$0xff]
    %v85 = vld [vmem:[#allocation5 + $0xb8] sm:$0xff]
    %v86 = vld [vmem:[#allocation5 + $0xc0] sm:$0xff]
    %v87 = vld [vmem:[#allocation5 + $0xc8] sm:$0xff]
    %v88 = vld [vmem:[#allocation5 + $0xd0] sm:$0xff]
    %v89 = vld [vmem:[#allocation5 + $0xd8] sm:$0xff]
    %v90 = vld [vmem:[#allocation5 + $0xe0] sm:$0xff]
    %v91 = vld [vmem:[#allocation5 + $0xe8] sm:$0xff]
    %v92 = vld [vmem:[#allocation5 + $0xf0] sm:$0xff]
    %v93 = vld [vmem:[#allocation5 + $0xf8] sm:$0xff]
    %94 = vmatprep.subr.mxu0 0.0
    %95 = vmatpush1.msra.mxu0 %v62
    %96 = vmatprep.subr.mxu0 0.0
    %97 = vmatpush1.msra.mxu0 %v63
    %98 = vmatprep.subr.mxu0 0.0
    %99 = vmatpush1.msra.mxu0 %v64
    %100 = vmatprep.subr.mxu0 0.0
    %101 = vmatpush1.msra.mxu0 %v65
    %102 = vmatprep.subr.mxu0 0.0
    %103 = vmatpush1.msra.mxu0 %v66
    %104 = vmatprep.subr.mxu0 0.0
    %105 = vmatpush1.msra.mxu0 %v67
    %106 = vmatprep.subr.mxu0 0.0
    %107 = vmatpush1.msra.mxu0 %v68
    %108 = vmatprep.subr.mxu0 0.0
    %109 = vmatpush1.msra.mxu0 %v69
    %110 = vmatprep.subr.mxu0 0.0
    %111 = vmatpush1.msra.mxu0 %v70
    %112 = vmatprep.subr.mxu0 0.0
    %113 = vmatpush1.msra.mxu0 %v71
    %114 = vmatprep.subr.mxu0 0.0
    %115 = vmatpush1.msra.mxu0 %v72
    %116 = vmatprep.subr.mxu0 0.0
    %117 = vmatpush1.msra.mxu0 %v73
    %118 = vmatprep.subr.mxu0 0.0
    %119 = vmatpush1.msra.mxu0 %v74
    %120 = vmatprep.subr.mxu0 0.0
    %121 = vmatpush1.msra.mxu0 %v75
    %122 = vmatprep.subr.mxu0 0.0
    %123 = vmatpush1.msra.mxu0 %v76
    %124 = vmatprep.subr.mxu0 0.0
    %125 = vmatpush1.msra.mxu0 %v77
    %126 = vmatprep.subr.mxu0 0.0
    %127 = vmatpush1.msra.mxu0 %v78
    %128 = vmatprep.subr.mxu0 0.0
    %129 = vmatpush1.msra.mxu0 %v79
    %130 = vmatprep.subr.mxu0 0.0
    %131 = vmatpush1.msra.mxu0 %v80
    %132 = vmatprep.subr.mxu0 0.0
    %133 = vmatpush1.msra.mxu0 %v81
    %134 = vmatprep.subr.mxu0 0.0
    %135 = vmatpush1.msra.mxu0 %v82
    %136 = vmatprep.subr.mxu0 0.0
    %137 = vmatpush1.msra.mxu0 %v83
    %138 = vmatprep.subr.mxu0 0.0
    %139 = vmatpush1.msra.mxu0 %v84
    %140 = vmatprep.subr.mxu0 0.0
    %141 = vmatpush1.msra.mxu0 %v85
    %142 = vmatprep.subr.mxu0 0.0
    %143 = vmatpush1.msra.mxu0 %v86
    %144 = vmatprep.subr.mxu0 0.0
    %145 = vmatpush1.msra.mxu0 %v87
    %146 = vmatprep.subr.mxu0 0.0
    %147 = vmatpush1.msra.mxu0 %v88
    %148 = vmatprep.subr.mxu0 0.0
    %149 = vmatpush1.msra.mxu0 %v89
    %150 = vmatprep.subr.mxu0 0.0
    %151 = vmatpush1.msra.mxu0 %v90
    %152 = vmatprep.subr.mxu0 0.0
    %153 = vmatpush1.msra.mxu0 %v91
    %154 = vmatprep.subr.mxu0 0.0
    %155 = vmatpush1.msra.mxu0 %v92
    %156 = vmatprep.subr.mxu0 0.0
    %157 = vmatpush1.msra.mxu0 %v93
    %158 = vmatprep.mubr.f32.mxu0 %v59
    %159 = vmatmul.mubr.f32.gmra.mrb[0].mxu0 %v58
    %v160 = vpop.f32.mrb[0].mxu0
    %v161 = vadd.f32 0.0, %v160
    %v162 = vpop.f32.mrb[0].mxu0
    %163 = vmatprep.mubr.f32.mxu0 %v61
    %164 = vmatmul.mubr.f32.gmra.mrb[0].mxu0 %v60
    %v165 = vpop.f32.mrb[0].mxu0
    %v166 = vadd.f32 0.0, %v165
    %v167 = vpop.f32.mrb[0].mxu0
    %168 = vdwg.mxu0
    %v169 = vadd.f32 %v56, %v161
    %v170 = vadd.f32 %v57, %v166
    %171 = vst [vmem:[#allocation7] sm:$0xff] %v169
    %172 = vst [vmem:[#allocation7 + $0x8] sm:$0xff] %v170
    // Predicated region
    $region26: #{tpu_custom_call.1} parent=1 // pred_check
      _
    $region27: #{tpu_custom_call.1} parent=1 // pred_check_branch
      %174 = sbr.rel (0) target = $region29
    $region28: #{tpu_custom_call.1} parent=1 // pred_region
      %s176 = ssub.s32 256, 256
      %177 = vsyncadd [#allocation4], %s176
      %s178 = sshll.u32 [#allocation7], 4
      %s179 = int_to_ptr.vmem [resolvable:$true] %s178
      %184 = dma.vmem_to_hbm [thread:$0]  %s179, 256, %s3, [#allocation4], 128, 128, 8
    $region29: #{tpu_custom_call.1} parent=1 // pred_fallthru
      _
    // Predicated region
    $region30: #{tpu_custom_call.1} parent=1 // pred_check
      _
    $region31: #{tpu_custom_call.1} parent=1 // pred_check_branch
      %186 = sbr.rel (0) target = $region33
    $region32: #{tpu_custom_call.1} parent=1 // pred_region
      %187 = dma.done [#allocation4], 256
    $region33: #{tpu_custom_call.1} parent=1 // pred_fallthru
      _
    %188 = vsyncpa [#allocation3], 1
    %189 = vsyncpa [#allocation6], 1
    %190 = vsyncpa [#allocation4], 1

</llo_original>
